<compile_context>
chip_gen: v7x
topology: tpu7x:2x2x1
jax: 0.10.0
libtpu: 0.0.40
codegen_flags: <defaults>
</compile_context>

<pallas_src>
import math

import jax
import jax.numpy as jnp
from jax.experimental import pallas as pl
from jax.experimental.pallas import tpu as pltpu


def _round_up(a, b):
    return pl.cdiv(a, b) * b


def _vmem_capacity_bytes():
    try:
        return int(pltpu.get_tpu_info().vmem_capacity_bytes)
    except Exception:
        return 64 << 20  # conservative default (v7x per-TensorCore VMEM)


# ---------------------------------------------------------------------------
# Kernels
# ---------------------------------------------------------------------------
def _adapter_kernel(x_ref, wa_ref, wb_ref, o_ref):
    # x_ref : (tm, Dp) row tile; wa_ref: (Dp, Hp); wb_ref: (Hp, Dp); o_ref: (tm, Dp)
    x = x_ref[...].astype(wa_ref.dtype)  # no-op for f32; bf16 streaming if enabled
    h = jnp.dot(x, wa_ref[...], preferred_element_type=jnp.float32)
    h = jnp.maximum(h, 0.0)  # ReLU
    out = jnp.dot(h.astype(wb_ref.dtype), wb_ref[...],
                  preferred_element_type=jnp.float32)
    o_ref[...] = out.astype(o_ref.dtype)


def _adapter_kernel_htiled(x_ref, wa_ref, wb_ref, o_ref, acc_ref):
    # grid = (row tiles [parallel], H chunks [arbitrary]); exact because ReLU is
    # elementwise over the hidden dim: sum_k relu(x @ Wa_k) @ Wb_k.
    k = pl.program_id(1)

    @pl.when(k == 0)
    def _():
        acc_ref[...] = jnp.zeros_like(acc_ref)

    x = x_ref[...].astype(wa_ref.dtype)
    h = jnp.dot(x, wa_ref[...], preferred_element_type=jnp.float32)
    h = jnp.maximum(h, 0.0)
    acc_ref[...] += jnp.dot(h.astype(wb_ref.dtype), wb_ref[...],
                            preferred_element_type=jnp.float32)
    o_ref[...] = acc_ref[...].astype(o_ref.dtype)


# ---------------------------------------------------------------------------
# Wrapper
# ---------------------------------------------------------------------------
def adapter_forward(x, wa, wb, *, compute_dtype=None, force_h_tiling=False,
                    h_tile=None):
    """Fused Adapter forward: relu(x @ wa.T) @ wb.T.

    x : (..., D) activations.  wa: (H, D) = conv_A.weight.  wb: (D, H) = conv_B.weight.
    compute_dtype=None keeps f32 streaming (matches torch reference);
    jnp.bfloat16 halves weight VMEM/DMA at ~1e-2 relative numerics cost.
    """
    orig_shape = x.shape
    D = orig_shape[-1]
    H = wa.shape[0]
    assert wa.shape == (H, D) and wb.shape == (D, H)
    M = int(math.prod(orig_shape[:-1]))

    w_dtype = compute_dtype if compute_dtype is not None else wa.dtype
    wa_t = wa.T.astype(w_dtype)  # (D, H)
    wb_t = wb.T.astype(w_dtype)  # (H, D)

    # Lane-dense feature padding only when D/H are not 128-aligned. Zero padding
    # is exact: padded Wa^T cols are zero -> padded hidden is zero -> padded
    # Wb^T rows contribute nothing; padded output cols are sliced off.
    Dp = D if D % 128 == 0 else _round_up(D, 128)
    Hp = H if H % 128 == 0 else _round_up(H, 128)

    x2 = x.reshape(M, D)
    if Dp != D:
        x2 = jnp.pad(x2, ((0, 0), (0, Dp - D)))
    if (Dp, Hp) != (D, H):
        wa_t = jnp.pad(wa_t, ((0, Dp - D), (0, Hp - H)))
        wb_t = jnp.pad(wb_t, ((0, Hp - H), (0, Dp - D)))

    x_isz = x.dtype.itemsize
    o_isz = x.dtype.itemsize
    w_isz = jnp.dtype(w_dtype).itemsize

    # Chip-aware VMEM budget (v5e/v6e: 128 MiB, v7x: 64 MiB per TensorCore).
    vmem_cap = _vmem_capacity_bytes()
    vmem_limit = min(int(0.85 * vmem_cap), 100 << 20)
    budget = int(0.8 * vmem_limit)  # footprint target; leaves compiler headroom

    # Single-buffered resident weight slabs.
    weight_bytes = (Dp * Hp + Hp * Dp) * w_isz

    def pick_tm(per_row_bytes, fixed_bytes, tm_cap=2048):
        avail = budget - fixed_bytes
        if avail < per_row_bytes * 8:
            return None
        tm = min((avail // per_row_bytes) // 8 * 8, tm_cap, _round_up(M, 8))
        # Guarantee >= 2 grid steps so ("parallel",) splits rows across both
        # TensorCores on v7x (no-op for tiny M; negligible cost on 1-TC chips).
        if M > 8 and pl.cdiv(M, tm) < 2:
            tm = _round_up(pl.cdiv(M, 2), 8)
        return max(int(tm), 8)

    # Per-row VMEM: double-buffered x and out tiles + f32 intermediates
    # (hidden (tm, Hp) and pre-cast (tm, Dp) output).
    per_row_resident = Dp * (2 * x_isz + 2 * o_isz + 4) + Hp * 4
    tm_res = pick_tm(per_row_resident, weight_bytes)

    use_h_tiling = (force_h_tiling or tm_res is None
                    or weight_bytes > 0.6 * budget)

    cost = pl.CostEstimate(
        flops=4 * M * D * H,
        transcendentals=0,
        bytes_accessed=int(M * Dp * (x_isz + o_isz) + 2 * Dp * Hp * w_isz),
    )
    cparams = pltpu.CompilerParams(
        dimension_semantics=("parallel",) if not use_h_tiling
        else ("parallel", "arbitrary"),
        vmem_limit_bytes=int(vmem_limit),
    )

    if not use_h_tiling:
        tm = tm_res
        grid = (pl.cdiv(M, tm),)  # ragged last tile handled by Pallas (no M pad)

        def weight_spec(shape, single_buffer):
            if single_buffer:
                # Constant index_map -> DMA'd once; single-buffer to halve the
                # resident weight VMEM footprint (v7x: 64 MiB VMEM).
                return pl.BlockSpec(shape, lambda i: (0, 0),
                                    pipeline_mode=pl.Buffered(1))
            return pl.BlockSpec(shape, lambda i: (0, 0))

        def run(single_buffer_weights):
            return pl.pallas_call(
                _adapter_kernel,
                out_shape=jax.ShapeDtypeStruct((M, Dp), x.dtype),
                grid=grid,
                in_specs=[
                    pl.BlockSpec((tm, Dp), lambda i: (i, 0)),
                    weight_spec((Dp, Hp), single_buffer_weights),
                    weight_spec((Hp, Dp), single_buffer_weights),
                ],
                out_specs=pl.BlockSpec((tm, Dp), lambda i: (i, 0)),
                compiler_params=cparams,
                cost_estimate=cost,
            )(x2, wa_t, wb_t)

        try:
            out2 = run(True)
        except Exception:
            # pipeline_mode / Buffered(1) support varies across JAX versions;
            # double-buffered weights are functionally identical (2x weight VMEM).
            out2 = run(False)
    else:
        # H-tiled fallback: weight slabs too large to keep fully resident.
        if h_tile is not None:
            th = _round_up(max(int(h_tile), 128), 128)
        else:
            th = min(Hp, 512)
            # Keep the double-buffered Wa/Wb chunks within ~half the budget.
            th_max = (max(budget // 2, 1) // (4 * Dp * w_isz)) // 128 * 128
            if th_max >= 128:
                th = min(th, th_max)
        th = min(th, Hp)
        Hpp = _round_up(Hp, th)
        if Hpp != Hp:
            wa_t = jnp.pad(wa_t, ((0, 0), (0, Hpp - Hp)))
            wb_t = jnp.pad(wb_t, ((0, Hpp - Hp), (0, 0)))

        # Per-row VMEM: x/out tiles (double-buffered), f32 accumulator scratch,
        # f32 hidden chunk and pre-cast output.
        per_row_tiled = Dp * (2 * x_isz + 2 * o_isz + 4 + 4) + th * 4
        wtile_bytes = 2 * 2 * Dp * th * w_isz  # double-buffered Wa/Wb chunks
        tm = pick_tm(per_row_tiled, wtile_bytes)
        if tm is None:
            tm = 8  # TODO(synk): absurdly large D could still exceed VMEM here.
        grid = (pl.cdiv(M, tm), Hpp // th)

        out2 = pl.pallas_call(
            _adapter_kernel_htiled,
            out_shape=jax.ShapeDtypeStruct((M, Dp), x.dtype),
            grid=grid,
            in_specs=[
                pl.BlockSpec((tm, Dp), lambda i, k: (i, 0)),
                pl.BlockSpec((Dp, th), lambda i, k: (0, k)),
                pl.BlockSpec((th, Dp), lambda i, k: (k, 0)),
            ],
            out_specs=pl.BlockSpec((tm, Dp), lambda i, k: (i, 0)),
            scratch_shapes=[pltpu.VMEM((tm, Dp), jnp.float32)],
            compiler_params=cparams,
            cost_estimate=cost,
        )(x2, wa_t, wb_t)

    if Dp != D:
        out2 = out2[:, :D]
    return out2.reshape(orig_shape)


def xavier_uniform(key, shape):
    # torch nn.init.xavier_uniform_ for a Linear weight (out_features, in_features).
    fan_out, fan_in = shape
    bound = math.sqrt(6.0 / (fan_in + fan_out))
    return jax.random.uniform(key, shape, jnp.float32, minval=-bound, maxval=bound)


if __name__ == "__main__":
    B, S, D, Hdim = 2, 8, 32, 8
    key = jax.random.PRNGKey(0)
    k_x, k_a, k_b, k_x2, k_a2, k_b2 = jax.random.split(key, 6)

    x = jax.random.normal(k_x, (B, S, D), dtype=jnp.float32)
    wa = xavier_uniform(k_a, (Hdim, D))   # conv_A.weight  (hidden_dim, in_features)
    wb = xavier_uniform(k_b, (D, Hdim))   # conv_B.weight  (in_features, hidden_dim)
    # NOTE: nn.Dropout(p=0.1) is defined in __init__ but never applied in
    # forward, so it is (correctly) omitted here.

    ref = jnp.maximum(x @ wa.T, 0.0) @ wb.T

    # 1) Resident-weight fused path (f32, matches the torch reference numerics).
    out = adapter_forward(x, wa, wb)
    jax.block_until_ready(out)
    assert out.shape == (B, S, D)
    assert jnp.allclose(out, ref, atol=1e-5, rtol=1e-5)

    # 2) H-tiled fallback path (forced here; chosen automatically when the
    #    weights are too large to stay resident, e.g. big D*H on v7x).
    D2, H2 = 256, 384
    x2 = jax.random.normal(k_x2, (B, 2 * S, D2), dtype=jnp.float32)
    wa2 = xavier_uniform(k_a2, (H2, D2))
    wb2 = xavier_uniform(k_b2, (D2, H2))
    out2_res = adapter_forward(x2, wa2, wb2)
    out2_til = adapter_forward(x2, wa2, wb2, force_h_tiling=True, h_tile=128)
    jax.block_until_ready((out2_res, out2_til))
    ref2 = jnp.maximum(x2 @ wa2.T, 0.0) @ wb2.T
    assert jnp.allclose(out2_til, out2_res, atol=1e-5, rtol=1e-5)  # chunking exact
    assert jnp.allclose(out2_res, ref2, atol=2e-2, rtol=2e-2)      # sanity vs XLA

    # 3) Optional bf16 weight/activation streaming (halves weight VMEM + DMA;
    #    numerics deviate from the f32 reference -> looser tolerance).
    out_bf16 = adapter_forward(x, wa, wb, compute_dtype=jnp.bfloat16)
    jax.block_until_ready(out_bf16)
    assert jnp.allclose(out_bf16, ref, atol=5e-2, rtol=5e-2)

    print("KERNEL_OK")
</pallas_src>

<mosaic_0001>
module attributes {stable_mosaic.version = 11 : i64} {
  func.func @_adapter_kernel(%arg0: i32, %arg1: memref<8x128xf32, #tpu.memory_space<vmem>>, %arg2: memref<128x128xf32, #tpu.memory_space<vmem>>, %arg3: memref<128x128xf32, #tpu.memory_space<vmem>>, %arg4: memref<8x128xf32, #tpu.memory_space<vmem>>) attributes {dimension_semantics = [#tpu.dimension_semantics<parallel>], iteration_bounds = array<i64: 2>, scalar_prefetch = 0 : i64, scratch_operands = 0 : i64, tpu.core_type = #tpu.core_type<tc>, window_params = [{transform_indices = @transform_0, window_bounds = array<i64: 8, 128>}, {pipeline_mode = #tpu.pipeline_mode<synchronous>, transform_indices = @transform_1, window_bounds = array<i64: 128, 128>}, {pipeline_mode = #tpu.pipeline_mode<synchronous>, transform_indices = @transform_2, window_bounds = array<i64: 128, 128>}, {transform_indices = @transform_3, window_bounds = array<i64: 8, 128>}]} {
    %c0 = arith.constant 0 : index
    %c0_0 = arith.constant 0 : index
    %0 = vector.load %arg1[%c0, %c0_0] : memref<8x128xf32, #tpu.memory_space<vmem>>, vector<8x128xf32>
    %c0_1 = arith.constant 0 : index
    %c0_2 = arith.constant 0 : index
    %1 = vector.load %arg2[%c0_1, %c0_2] : memref<128x128xf32, #tpu.memory_space<vmem>>, vector<128x128xf32>
    %cst = arith.constant dense<0.000000e+00> : vector<8x128xf32>
    %2 = tpu.matmul %0, %1, %cst {dimension_numbers = #tpu.dot_dimension_numbers<[1], [0], [0], [1], [0, 0, 1, 1], [], []>} : vector<8x128xf32>, vector<128x128xf32>, vector<8x128xf32> -> vector<8x128xf32>
    %cst_3 = arith.constant 0.000000e+00 : f32
    %3 = vector.broadcast %cst_3 : f32 to vector<8x128xf32>
    %4 = arith.maximumf %2, %3 : vector<8x128xf32>
    %c0_4 = arith.constant 0 : index
    %c0_5 = arith.constant 0 : index
    %5 = vector.load %arg3[%c0_4, %c0_5] : memref<128x128xf32, #tpu.memory_space<vmem>>, vector<128x128xf32>
    %cst_6 = arith.constant dense<0.000000e+00> : vector<8x128xf32>
    %6 = tpu.matmul %4, %5, %cst_6 {dimension_numbers = #tpu.dot_dimension_numbers<[1], [0], [0], [1], [0, 0, 1, 1], [], []>} : vector<8x128xf32>, vector<128x128xf32>, vector<8x128xf32> -> vector<8x128xf32>
    %c0_7 = arith.constant 0 : index
    %c0_8 = arith.constant 0 : index
    %7 = vector.load %arg4[%c0_7, %c0_8] : memref<8x128xf32, #tpu.memory_space<vmem>>, vector<8x128xf32>
    tpu.vector_store %arg4[%c0_7, %c0_8], %6 {strides = array<i32>} : memref<8x128xf32, #tpu.memory_space<vmem>>, vector<8x128xf32>,
    return
  }
  func.func @transform_0(%arg0: i32) -> (i32, i32) {
    %c0_i32 = arith.constant 0 : i32
    %c0_i32_0 = arith.constant 0 : i32
    return %arg0, %c0_i32 : i32, i32
  }
  func.func @transform_1(%arg0: i32) -> (i32, i32) {
    %c0_i32 = arith.constant 0 : i32
    %c0_i32_0 = arith.constant 0 : i32
    %c0_i32_1 = arith.constant 0 : i32
    return %c0_i32, %c0_i32_0 : i32, i32
  }
  func.func @transform_2(%arg0: i32) -> (i32, i32) {
    %c0_i32 = arith.constant 0 : i32
    %c0_i32_0 = arith.constant 0 : i32
    %c0_i32_1 = arith.constant 0 : i32
    return %c0_i32, %c0_i32_0 : i32, i32
  }
  func.func @transform_3(%arg0: i32) -> (i32, i32) {
    %c0_i32 = arith.constant 0 : i32
    %c0_i32_0 = arith.constant 0 : i32
    return %arg0, %c0_i32 : i32, i32
  }
}

module attributes {stable_mosaic.version = 11 : i64} {
  func.func @_adapter_kernel(%arg0: i32, %arg1: memref<8x128xf32, #tpu.memory_space<vmem>>, %arg2: memref<128x128xf32, #tpu.memory_space<vmem>>, %arg3: memref<128x128xf32, #tpu.memory_space<vmem>>, %arg4: memref<8x128xf32, #tpu.memory_space<vmem>>) attributes {dimension_semantics = [#tpu.dimension_semantics<parallel>], iteration_bounds = array<i64: 2>, scalar_prefetch = 0 : i64, scratch_operands = 0 : i64, tpu.core_type = #tpu.core_type<tc>, window_params = [{transform_indices = @transform_0, window_bounds = array<i64: 8, 128>}, {pipeline_mode = #tpu.pipeline_mode<synchronous>, transform_indices = @transform_1, window_bounds = array<i64: 128, 128>}, {pipeline_mode = #tpu.pipeline_mode<synchronous>, transform_indices = @transform_2, window_bounds = array<i64: 128, 128>}, {transform_indices = @transform_3, window_bounds = array<i64: 8, 128>}]} {
    %c0 = arith.constant 0 : index
    %c0_0 = arith.constant 0 : index
    %0 = vector.load %arg1[%c0, %c0_0] : memref<8x128xf32, #tpu.memory_space<vmem>>, vector<8x128xf32>
    %c0_1 = arith.constant 0 : index
    %c0_2 = arith.constant 0 : index
    %1 = vector.load %arg2[%c0_1, %c0_2] : memref<128x128xf32, #tpu.memory_space<vmem>>, vector<128x128xf32>
    %cst = arith.constant dense<0.000000e+00> : vector<8x128xf32>
    %2 = tpu.matmul %0, %1, %cst {dimension_numbers = #tpu.dot_dimension_numbers<[1], [0], [0], [1], [0, 0, 1, 1], [], []>} : vector<8x128xf32>, vector<128x128xf32>, vector<8x128xf32> -> vector<8x128xf32>
    %cst_3 = arith.constant 0.000000e+00 : f32
    %3 = vector.broadcast %cst_3 : f32 to vector<8x128xf32>
    %4 = arith.maximumf %2, %3 : vector<8x128xf32>
    %c0_4 = arith.constant 0 : index
    %c0_5 = arith.constant 0 : index
    %5 = vector.load %arg3[%c0_4, %c0_5] : memref<128x128xf32, #tpu.memory_space<vmem>>, vector<128x128xf32>
    %cst_6 = arith.constant dense<0.000000e+00> : vector<8x128xf32>
    %6 = tpu.matmul %4, %5, %cst_6 {dimension_numbers = #tpu.dot_dimension_numbers<[1], [0], [0], [1], [0, 0, 1, 1], [], []>} : vector<8x128xf32>, vector<128x128xf32>, vector<8x128xf32> -> vector<8x128xf32>
    %c0_7 = arith.constant 0 : index
    %c0_8 = arith.constant 0 : index
    %7 = vector.load %arg4[%c0_7, %c0_8] : memref<8x128xf32, #tpu.memory_space<vmem>>, vector<8x128xf32>
    tpu.vector_store %arg4[%c0_7, %c0_8], %6 {strides = array<i32>} : memref<8x128xf32, #tpu.memory_space<vmem>>, vector<8x128xf32>,
    return
  }
  func.func @transform_0(%arg0: i32) -> (i32, i32) {
    %c0_i32 = arith.constant 0 : i32
    %c0_i32_0 = arith.constant 0 : i32
    return %arg0, %c0_i32 : i32, i32
  }
  func.func @transform_1(%arg0: i32) -> (i32, i32) {
    %c0_i32 = arith.constant 0 : i32
    %c0_i32_0 = arith.constant 0 : i32
    %c0_i32_1 = arith.constant 0 : i32
    return %c0_i32, %c0_i32_0 : i32, i32
  }
  func.func @transform_2(%arg0: i32) -> (i32, i32) {
    %c0_i32 = arith.constant 0 : i32
    %c0_i32_0 = arith.constant 0 : i32
    %c0_i32_1 = arith.constant 0 : i32
    return %c0_i32, %c0_i32_0 : i32, i32
  }
  func.func @transform_3(%arg0: i32) -> (i32, i32) {
    %c0_i32 = arith.constant 0 : i32
    %c0_i32_0 = arith.constant 0 : i32
    return %arg0, %c0_i32 : i32, i32
  }
}

</mosaic_0001>

<llo_original>
// kernel: tpu_custom_call.1
$region0: #{tpu_custom_call.1}
  #allocation0 [shape = 'u32[]', space=smem, size = 0x4, offset = 0x4, fixed_abs, tag = 'smem constant byte address 0x4 - core index']
  #allocation1 [shape = 'u32[144,128]{1,0:T(1,128)}', space=vmem, size = 0x12000, scoped, tag = 'internal scratch']
  %s0 = inlined_call_operand.hbm [shape: f32[16,128], index: 0, kind: input, shape index: {}]
  %s1 = inlined_call_operand.hbm [shape: f32[128,128], index: 1, kind: input, shape index: {}]
  %s2 = inlined_call_operand.hbm [shape: f32[128,128], index: 2, kind: input, shape index: {}]
  %s3 = inlined_call_operand.hbm [shape: f32[16,128], index: 3, kind: output, shape index: {}]
  %s4 = sld [smem:[#allocation0]]
  $region57: #{tpu_custom_call.1} parent=0
    _
  %s6 = ssub.s32 1, %s4
  %s7 = scalar_select 0, %s6, %s4
  $region1: #{tpu_custom_call.1} parent=0
    #allocation2 [shape = 'u8[8192]{0}', space=vmem, size = 0x2000, scoped, tag = 'input window, operand 0']
    #allocation3 [shape = 's32[2]{0}', space=sflag, size = 0x8, scoped, tag = 'scoped memory for tpu_custom_call.1']
    #allocation4 [shape = 's32[2]{0}', space=sflag, size = 0x8, scoped, tag = 'scoped memory for tpu_custom_call.1']
    #allocation5 [shape = 'u8[65536]{0}', space=vmem, size = 0x10000, scoped, tag = 'input window, operand 1, single buffered']
    #allocation6 [shape = 's32[1]{0}', space=sflag, size = 0x4, scoped, tag = 'scoped memory for tpu_custom_call.1']
    #allocation7 [shape = 'u8[65536]{0}', space=vmem, size = 0x10000, scoped, tag = 'input window, operand 2, single buffered']
    #allocation8 [shape = 'u8[8192]{0}', space=vmem, size = 0x2000, scoped, tag = 'output window, operand 0']
    %8 = vsyncpa [#allocation3], 0
    %s9 = scalar_lea.sflag [#allocation3], 1
    %10 = vsyncpa %s9, 0
    %11 = vsyncpa [#allocation6], 0
    %12 = vsyncpa [#allocation4], 0
    %s13 = scalar_lea.sflag [#allocation4], 1
    %14 = vsyncpa %s13, 0
    loop: start=0, step=1, limit=4
    $region2: #{tpu_custom_call.1} parent=1 // loop_pre_header
      _
    $region3: #{tpu_custom_call.1} parent=1 // loop_header
      %s16 = sphi 0, %s20
      %p17 = scmp.ge.s32.totalorder %s16, 4
      %s26 = sphi 0, %s28
      %s29 = sphi 0, %s26
      %s30 = sphi 0, %s29
      %s46 = sphi 0, %s30
      %s50 = sphi 0, %s50
      %s52 = sphi 0, %s50
      %s53 = sphi 0, %s52
      %s67 = sphi 0, %s53
      %s71 = sphi 0, %s71
      %s73 = sphi 0, %s71
      %s74 = sphi 0, %s73
      %s88 = sphi 0, %s74
      %s94 = sphi 0, %s96
      %s97 = sphi 0, %s94
      %s98 = sphi 0, %s97
      %s114 = sphi 0, %s98
    $region4: #{tpu_custom_call.1} parent=1 // loop_header_branch
      %19 = sbr.rel (%p17) target = $region8
    $region5: #{tpu_custom_call.1} parent=1 // loop_body
      %s21 = ssub.s32 %s16, 1
      %s22 = ssub.s32 %s16, 2
      %s23 = sadd.s32 %s16, 1
      %s24 = ssub.s32 %s16, %s23
      %p25 = scmp.eq.s32.totalorder %s24, 0
      %s27 = sadd.s32 %s26, 1
      %s28 = scalar_select %p25, %s26, %s27
      %p31 = pneg %p25
      %p32 = scmp.eq.s32.totalorder %s16, 1
      %p33 = por %p31, %p32
      %p34 = scmp.ne.s32.totalorder %s26, %s29
      %p35 = scmp.eq.s32.totalorder %s16, 0
      %p36 = por %p34, %p35
      %p37 = scmp.ne.s32.totalorder %s26, %s29
      %p38 = scmp.eq.s32.totalorder %s21, 1
      %p39 = por %p37, %p38
      %p40 = scmp.ne.s32.totalorder %s29, %s30
      %p41 = scmp.eq.s32.totalorder %s21, 0
      %p42 = por %p40, %p41
      %p43 = scmp.ne.s32.totalorder %s29, %s30
      %p44 = scmp.eq.s32.totalorder %s22, 1
      %p45 = por %p43, %p44
      %p47 = scmp.ne.s32.totalorder %s30, %s46
      %p48 = scmp.eq.s32.totalorder %s22, 0
      %p49 = por %p47, %p48
      %s51 = sadd.s32 %s50, 1
      %p54 = scmp.eq.s32.totalorder %s16, 1
      %p55 = scmp.ne.s32.totalorder %s50, %s52
      %p56 = scmp.eq.s32.totalorder %s16, 0
      %p57 = por %p55, %p56
      %p58 = scmp.ne.s32.totalorder %s50, %s52
      %p59 = scmp.eq.s32.totalorder %s21, 1
      %p60 = por %p58, %p59
      %p61 = scmp.ne.s32.totalorder %s52, %s53
      %p62 = scmp.eq.s32.totalorder %s21, 0
      %p63 = por %p61, %p62
      %p64 = scmp.ne.s32.totalorder %s52, %s53
      %p65 = scmp.eq.s32.totalorder %s22, 1
      %p66 = por %p64, %p65
      %p68 = scmp.ne.s32.totalorder %s53, %s67
      %p69 = scmp.eq.s32.totalorder %s22, 0
      %p70 = por %p68, %p69
      %s72 = sadd.s32 %s71, 1
      %p75 = scmp.eq.s32.totalorder %s16, 1
      %p76 = scmp.ne.s32.totalorder %s71, %s73
      %p77 = scmp.eq.s32.totalorder %s16, 0
      %p78 = por %p76, %p77
      %p79 = scmp.ne.s32.totalorder %s71, %s73
      %p80 = scmp.eq.s32.totalorder %s21, 1
      %p81 = por %p79, %p80
      %p82 = scmp.ne.s32.totalorder %s73, %s74
      %p83 = scmp.eq.s32.totalorder %s21, 0
      %p84 = por %p82, %p83
      %p85 = scmp.ne.s32.totalorder %s73, %s74
      %p86 = scmp.eq.s32.totalorder %s22, 1
      %p87 = por %p85, %p86
      %p89 = scmp.ne.s32.totalorder %s74, %s88
      %p90 = scmp.eq.s32.totalorder %s22, 0
      %p91 = por %p89, %p90
      %s92 = ssub.s32 %s16, %s23
      %p93 = scmp.eq.s32.totalorder %s92, 0
      %s95 = sadd.s32 %s94, 1
      %s96 = scalar_select %p93, %s94, %s95
      %p99 = pneg %p93
      %p100 = scmp.eq.s32.totalorder %s16, 1
      %p101 = por %p99, %p100
      %p102 = scmp.ne.s32.totalorder %s94, %s97
      %p103 = scmp.eq.s32.totalorder %s16, 0
      %p104 = por %p102, %p103
      %p105 = scmp.ne.s32.totalorder %s94, %s97
      %p106 = scmp.eq.s32.totalorder %s21, 1
      %p107 = por %p105, %p106
      %p108 = scmp.ne.s32.totalorder %s97, %s98
      %p109 = scmp.eq.s32.totalorder %s21, 0
      %p110 = por %p108, %p109
      %p111 = scmp.ne.s32.totalorder %s97, %s98
      %p112 = scmp.eq.s32.totalorder %s22, 1
      %p113 = por %p111, %p112
      %p115 = scmp.ne.s32.totalorder %s98, %s114
      %p116 = scmp.eq.s32.totalorder %s22, 0
      %p117 = por %p115, %p116
      %p118 = scmp.le.s32.totalorder 1, %s16
      %p119 = scmp.lt.s32.totalorder %s16, 3
      %p120 = pnand %p118, %p119
      %p121 = pneg %p120
      // Predicated region
      $region9: #{tpu_custom_call.1} parent=5 // pred_check
        _
      $region10: #{tpu_custom_call.1} parent=5 // pred_check_branch
        %123 = sbr.rel (%p120) target = $region12
      $region11: #{tpu_custom_call.1} parent=5 // pred_region
        %s124 = ssub.s32 %s16, 1
        // Predicated region
        $region13: #{tpu_custom_call.1} parent=11 // pred_check
          %p125 = pneg %p63
        $region14: #{tpu_custom_call.1} parent=11 // pred_check_branch
          %127 = sbr.rel (%p125) target = $region16
        $region15: #{tpu_custom_call.1} parent=11 // pred_region
          %s129 = ssub.s32 2048, 2048
          %130 = vsyncadd [#allocation6], %s129
          %s131 = sshll.u32 [#allocation5], 4
          %s132 = int_to_ptr.vmem [resolvable:$true] %s131
          %137 = dma.hbm_to_vmem [thread:$0]  %s1, 2048, %s132, [#allocation6], 128, 128, 8
        $region16: #{tpu_custom_call.1} parent=11 // pred_fallthru
          _
        // Predicated region
        $region17: #{tpu_custom_call.1} parent=11 // pred_check
          %p138 = pneg %p84
        $region18: #{tpu_custom_call.1} parent=11 // pred_check_branch
          %140 = sbr.rel (%p138) target = $region20
        $region19: #{tpu_custom_call.1} parent=11 // pred_region
          %s142 = ssub.s32 2048, 2048
          %143 = vsyncadd [#allocation6], %s142
          %s144 = sshll.u32 [#allocation7], 4
          %s145 = int_to_ptr.vmem [resolvable:$true] %s144
          %150 = dma.hbm_to_vmem [thread:$0]  %s2, 2048, %s145, [#allocation6], 128, 128, 8
        $region20: #{tpu_custom_call.1} parent=11 // pred_fallthru
          _
      $region12: #{tpu_custom_call.1} parent=5 // pred_fallthru
        _
      %p151 = scmp.lt.s32.totalorder %s16, 2
      // Predicated region
      $region21: #{tpu_custom_call.1} parent=5 // pred_check
        %p152 = pneg %p151
      $region22: #{tpu_custom_call.1} parent=5 // pred_check_branch
        %154 = sbr.rel (%p152) target = $region24
      $region23: #{tpu_custom_call.1} parent=5 // pred_region
        // Predicated region
        $region25: #{tpu_custom_call.1} parent=23 // pred_check
          %p155 = pneg %p36
        $region26: #{tpu_custom_call.1} parent=23 // pred_check_branch
          %157 = sbr.rel (%p155) target = $region28
        $region27: #{tpu_custom_call.1} parent=23 // pred_region
          %s158 = sand.u32 %s26, 1
          %s159 = scalar_lea.sflag [#allocation3], %s158
          %s160 = sand.u32 %s26, 1
          %s161 = smul.addr %s160, 8
          %s162 = scalar_lea.vmem [#allocation2], %s161
          %s164 = ssub.s32 128, 128
          %165 = vsyncadd %s159, %s164
          %s166 = smul.addr %s16, 128
          %s167 = scalar_lea.hbm %s0, %s166
          %s169 = sshll.u32 %s162, 4
          %s170 = int_to_ptr.vmem [resolvable:$true] %s169
          %172 = dma.hbm_to_vmem [thread:$0]  %s167, 128, %s170, %s159
        $region28: #{tpu_custom_call.1} parent=23 // pred_fallthru
          _
      $region24: #{tpu_custom_call.1} parent=5 // pred_fallthru
        _
      %p173 = scmp.le.s32.totalorder 1, %s16
      %p174 = scmp.lt.s32.totalorder %s16, 3
      %p175 = pnand %p173, %p174
      %p176 = pneg %p175
      // Predicated region
      $region29: #{tpu_custom_call.1} parent=5 // pred_check
        _
      $region30: #{tpu_custom_call.1} parent=5 // pred_check_branch
        %178 = sbr.rel (%p175) target = $region32
      $region31: #{tpu_custom_call.1} parent=5 // pred_region
        %s179 = ssub.s32 %s16, 1
        %s180 = sand.u32 %s29, 1
        %s181 = scalar_lea.sflag [#allocation3], %s180
        %s182 = sand.u32 %s29, 1
        %s183 = smul.addr %s182, 8
        %s184 = scalar_lea.vmem [#allocation2], %s183
        // Predicated region
        $region33: #{tpu_custom_call.1} parent=31 // pred_check
          %p185 = pneg %p42
        $region34: #{tpu_custom_call.1} parent=31 // pred_check_branch
          %187 = sbr.rel (%p185) target = $region36
        $region35: #{tpu_custom_call.1} parent=31 // pred_region
          %188 = dma.done %s181, 128
        $region36: #{tpu_custom_call.1} parent=31 // pred_fallthru
          _
        // Predicated region
        $region37: #{tpu_custom_call.1} parent=31 // pred_check
          %p189 = pneg %p63
        $region38: #{tpu_custom_call.1} parent=31 // pred_check_branch
          %191 = sbr.rel (%p189) target = $region40
        $region39: #{tpu_custom_call.1} parent=31 // pred_region
          %192 = dma.done [#allocation6], 2048
        $region40: #{tpu_custom_call.1} parent=31 // pred_fallthru
          _
        // Predicated region
        $region41: #{tpu_custom_call.1} parent=31 // pred_check
          %p193 = pneg %p84
        $region42: #{tpu_custom_call.1} parent=31 // pred_check_branch
          %195 = sbr.rel (%p193) target = $region44
        $region43: #{tpu_custom_call.1} parent=31 // pred_region
          %196 = dma.done [#allocation6], 2048
        $region44: #{tpu_custom_call.1} parent=31 // pred_fallthru
          _
        %s197 = sand.u32 %s29, 1
        %s198 = scalar_lea.sflag [#allocation3], %s197
        %s199 = sand.u32 %s29, 1
        %s200 = smul.addr %s199, 8
        %s201 = scalar_lea.vmem [#allocation2], %s200
        %p202 = pneg %p42
        %p203 = pneg %p39
        %p204 = pneg %p63
        %p205 = pneg %p60
        %p206 = pneg %p84
        %p207 = pneg %p81
        %p208 = pneg %p110
        %p209 = pneg %p107
        %s210 = sand.u32 %s97, 1
        %s211 = scalar_lea.sflag [#allocation4], %s210
        %s212 = sand.u32 %s97, 1
        %s213 = smul.addr %s212, 8
        %s214 = scalar_lea.vmem [#allocation8], %s213
        %v215 = vld [vmem:[%s184] sm:$0xff]
        %v216 = vld [vmem:[#allocation5] sm:$0xff]
        %v217 = vld [vmem:[#allocation5 + $0x8] sm:$0xff]
        %v218 = vld [vmem:[#allocation5 + $0x10] sm:$0xff]
        %v219 = vld [vmem:[#allocation5 + $0x18] sm:$0xff]
        %v220 = vld [vmem:[#allocation5 + $0x20] sm:$0xff]
        %v221 = vld [vmem:[#allocation5 + $0x28] sm:$0xff]
        %v222 = vld [vmem:[#allocation5 + $0x30] sm:$0xff]
        %v223 = vld [vmem:[#allocation5 + $0x38] sm:$0xff]
        %v224 = vld [vmem:[#allocation5 + $0x40] sm:$0xff]
        %v225 = vld [vmem:[#allocation5 + $0x48] sm:$0xff]
        %v226 = vld [vmem:[#allocation5 + $0x50] sm:$0xff]
        %v227 = vld [vmem:[#allocation5 + $0x58] sm:$0xff]
        %v228 = vld [vmem:[#allocation5 + $0x60] sm:$0xff]
        %v229 = vld [vmem:[#allocation5 + $0x68] sm:$0xff]
        %v230 = vld [vmem:[#allocation5 + $0x70] sm:$0xff]
        %v231 = vld [vmem:[#allocation5 + $0x78] sm:$0xff]
        %232 = vmatprep.subr.mxu0 0.0
        %233 = vmatpush1.msra.mxu0 %v216
        %234 = vmatprep.subr.mxu0 0.0
        %235 = vmatpush1.msra.mxu0 %v217
        %236 = vmatprep.subr.mxu0 0.0
        %237 = vmatpush1.msra.mxu0 %v218
        %238 = vmatprep.subr.mxu0 0.0
        %239 = vmatpush1.msra.mxu0 %v219
        %240 = vmatprep.subr.mxu0 0.0
        %241 = vmatpush1.msra.mxu0 %v220
        %242 = vmatprep.subr.mxu0 0.0
        %243 = vmatpush1.msra.mxu0 %v221
        %244 = vmatprep.subr.mxu0 0.0
        %245 = vmatpush1.msra.mxu0 %v222
        %246 = vmatprep.subr.mxu0 0.0
        %247 = vmatpush1.msra.mxu0 %v223
        %248 = vmatprep.subr.mxu0 0.0
        %249 = vmatpush1.msra.mxu0 %v224
        %250 = vmatprep.subr.mxu0 0.0
        %251 = vmatpush1.msra.mxu0 %v225
        %252 = vmatprep.subr.mxu0 0.0
        %253 = vmatpush1.msra.mxu0 %v226
        %254 = vmatprep.subr.mxu0 0.0
        %255 = vmatpush1.msra.mxu0 %v227
        %256 = vmatprep.subr.mxu0 0.0
        %257 = vmatpush1.msra.mxu0 %v228
        %258 = vmatprep.subr.mxu0 0.0
        %259 = vmatpush1.msra.mxu0 %v229
        %260 = vmatprep.subr.mxu0 0.0
        %261 = vmatpush1.msra.mxu0 %v230
        %262 = vmatprep.subr.mxu0 0.0
        %263 = vmatpush1.msra.mxu0 %v231
        %264 = vmatprep.subr.mxu0 0.0
        %265 = vmatpush1.msra.mxu0 0.0
        %266 = vmatprep.subr.mxu0 0.0
        %267 = vmatpush1.msra.mxu0 0.0
        %268 = vmatprep.subr.mxu0 0.0
        %269 = vmatpush1.msra.mxu0 0.0
        %270 = vmatprep.subr.mxu0 0.0
        %271 = vmatpush1.msra.mxu0 0.0
        %272 = vmatprep.subr.mxu0 0.0
        %273 = vmatpush1.msra.mxu0 0.0
        %274 = vmatprep.subr.mxu0 0.0
        %275 = vmatpush1.msra.mxu0 0.0
        %276 = vmatprep.subr.mxu0 0.0
        %277 = vmatpush1.msra.mxu0 0.0
        %278 = vmatprep.subr.mxu0 0.0
        %279 = vmatpush1.msra.mxu0 0.0
        %280 = vmatprep.subr.mxu0 0.0
        %281 = vmatpush1.msra.mxu0 0.0
        %282 = vmatprep.subr.mxu0 0.0
        %283 = vmatpush1.msra.mxu0 0.0
        %284 = vmatprep.subr.mxu0 0.0
        %285 = vmatpush1.msra.mxu0 0.0
        %286 = vmatprep.subr.mxu0 0.0
        %287 = vmatpush1.msra.mxu0 0.0
        %288 = vmatprep.subr.mxu0 0.0
        %289 = vmatpush1.msra.mxu0 0.0
        %290 = vmatprep.subr.mxu0 0.0
        %291 = vmatpush1.msra.mxu0 0.0
        %292 = vmatprep.subr.mxu0 0.0
        %293 = vmatpush1.msra.mxu0 0.0
        %294 = vmatprep.subr.mxu0 0.0
        %295 = vmatpush1.msra.mxu0 0.0
        %296 = vmatprep.mubr.f32.mxu0 0.0
        %297 = vmatmul.mubr.f32.gmra.mrb[0].mxu0 %v215
        %v298 = vpop.f32.mrb[0].mxu0
        %v299 = vadd.f32 0.0, %v298
        %v300 = vpop.f32.mrb[0].mxu0
        %301 = vdwg.mxu0
        %v302 = vmax.f32 %v299, 0.0
        %v303 = vld [vmem:[#allocation7] sm:$0xff]
        %v304 = vld [vmem:[#allocation7 + $0x8] sm:$0xff]
        %v305 = vld [vmem:[#allocation7 + $0x10] sm:$0xff]
        %v306 = vld [vmem:[#allocation7 + $0x18] sm:$0xff]
        %v307 = vld [vmem:[#allocation7 + $0x20] sm:$0xff]
        %v308 = vld [vmem:[#allocation7 + $0x28] sm:$0xff]
        %v309 = vld [vmem:[#allocation7 + $0x30] sm:$0xff]
        %v310 = vld [vmem:[#allocation7 + $0x38] sm:$0xff]
        %v311 = vld [vmem:[#allocation7 + $0x40] sm:$0xff]
        %v312 = vld [vmem:[#allocation7 + $0x48] sm:$0xff]
        %v313 = vld [vmem:[#allocation7 + $0x50] sm:$0xff]
        %v314 = vld [vmem:[#allocation7 + $0x58] sm:$0xff]
        %v315 = vld [vmem:[#allocation7 + $0x60] sm:$0xff]
        %v316 = vld [vmem:[#allocation7 + $0x68] sm:$0xff]
        %v317 = vld [vmem:[#allocation7 + $0x70] sm:$0xff]
        %v318 = vld [vmem:[#allocation7 + $0x78] sm:$0xff]
        %319 = vmatprep.subr.mxu0 0.0
        %320 = vmatpush1.msra.mxu0 %v303
        %321 = vmatprep.subr.mxu0 0.0
        %322 = vmatpush1.msra.mxu0 %v304
        %323 = vmatprep.subr.mxu0 0.0
        %324 = vmatpush1.msra.mxu0 %v305
        %325 = vmatprep.subr.mxu0 0.0
        %326 = vmatpush1.msra.mxu0 %v306
        %327 = vmatprep.subr.mxu0 0.0
        %328 = vmatpush1.msra.mxu0 %v307
        %329 = vmatprep.subr.mxu0 0.0
        %330 = vmatpush1.msra.mxu0 %v308
        %331 = vmatprep.subr.mxu0 0.0
        %332 = vmatpush1.msra.mxu0 %v309
        %333 = vmatprep.subr.mxu0 0.0
        %334 = vmatpush1.msra.mxu0 %v310
        %335 = vmatprep.subr.mxu0 0.0
        %336 = vmatpush1.msra.mxu0 %v311
        %337 = vmatprep.subr.mxu0 0.0
        %338 = vmatpush1.msra.mxu0 %v312
        %339 = vmatprep.subr.mxu0 0.0
        %340 = vmatpush1.msra.mxu0 %v313
        %341 = vmatprep.subr.mxu0 0.0
        %342 = vmatpush1.msra.mxu0 %v314
        %343 = vmatprep.subr.mxu0 0.0
        %344 = vmatpush1.msra.mxu0 %v315
        %345 = vmatprep.subr.mxu0 0.0
        %346 = vmatpush1.msra.mxu0 %v316
        %347 = vmatprep.subr.mxu0 0.0
        %348 = vmatpush1.msra.mxu0 %v317
        %349 = vmatprep.subr.mxu0 0.0
        %350 = vmatpush1.msra.mxu0 %v318
        %351 = vmatprep.subr.mxu0 0.0
        %352 = vmatpush1.msra.mxu0 0.0
        %353 = vmatprep.subr.mxu0 0.0
        %354 = vmatpush1.msra.mxu0 0.0
        %355 = vmatprep.subr.mxu0 0.0
        %356 = vmatpush1.msra.mxu0 0.0
        %357 = vmatprep.subr.mxu0 0.0
        %358 = vmatpush1.msra.mxu0 0.0
        %359 = vmatprep.subr.mxu0 0.0
        %360 = vmatpush1.msra.mxu0 0.0
        %361 = vmatprep.subr.mxu0 0.0
        %362 = vmatpush1.msra.mxu0 0.0
        %363 = vmatprep.subr.mxu0 0.0
        %364 = vmatpush1.msra.mxu0 0.0
        %365 = vmatprep.subr.mxu0 0.0
        %366 = vmatpush1.msra.mxu0 0.0
        %367 = vmatprep.subr.mxu0 0.0
        %368 = vmatpush1.msra.mxu0 0.0
        %369 = vmatprep.subr.mxu0 0.0
        %370 = vmatpush1.msra.mxu0 0.0
        %371 = vmatprep.subr.mxu0 0.0
        %372 = vmatpush1.msra.mxu0 0.0
        %373 = vmatprep.subr.mxu0 0.0
        %374 = vmatpush1.msra.mxu0 0.0
        %375 = vmatprep.subr.mxu0 0.0
        %376 = vmatpush1.msra.mxu0 0.0
        %377 = vmatprep.subr.mxu0 0.0
        %378 = vmatpush1.msra.mxu0 0.0
        %379 = vmatprep.subr.mxu0 0.0
        %380 = vmatpush1.msra.mxu0 0.0
        %381 = vmatprep.subr.mxu0 0.0
        %382 = vmatpush1.msra.mxu0 0.0
        %383 = vmatprep.mubr.f32.mxu0 0.0
        %384 = vmatmul.mubr.f32.gmra.mrb[0].mxu0 %v302
        %v385 = vpop.f32.mrb[0].mxu0
        %v386 = vadd.f32 0.0, %v385
        %v387 = vpop.f32.mrb[0].mxu0
        %388 = vdwg.mxu0
        %389 = vst [vmem:[%s214] sm:$0xff] %v386
        %s390 = sand.u32 %s97, 1
        %s391 = scalar_lea.sflag [#allocation4], %s390
        %s392 = sand.u32 %s97, 1
        %s393 = smul.addr %s392, 8
        %s394 = scalar_lea.vmem [#allocation8], %s393
        // Predicated region
        $region45: #{tpu_custom_call.1} parent=31 // pred_check
          %p395 = pneg %p107
        $region46: #{tpu_custom_call.1} parent=31 // pred_check_branch
          %397 = sbr.rel (%p395) target = $region48
        $region47: #{tpu_custom_call.1} parent=31 // pred_region
          %s399 = ssub.s32 128, 128
          %400 = vsyncadd %s391, %s399
          %s401 = smul.addr %s21, 128
          %s402 = scalar_lea.hbm %s3, %s401
          %s404 = sshll.u32 %s394, 4
          %s405 = int_to_ptr.vmem [resolvable:$true] %s404
          %407 = dma.vmem_to_hbm [thread:$0]  %s405, 128, %s402, %s391
        $region48: #{tpu_custom_call.1} parent=31 // pred_fallthru
          _
      $region32: #{tpu_custom_call.1} parent=5 // pred_fallthru
        _
      %p408 = scmp.le.s32.totalorder 2, %s16
      // Predicated region
      $region49: #{tpu_custom_call.1} parent=5 // pred_check
        %p409 = pneg %p408
      $region50: #{tpu_custom_call.1} parent=5 // pred_check_branch
        %411 = sbr.rel (%p409) target = $region52
      $region51: #{tpu_custom_call.1} parent=5 // pred_region
        %s412 = ssub.s32 %s16, 2
        // Predicated region
        $region53: #{tpu_custom_call.1} parent=51 // pred_check
          %p413 = pneg %p113
        $region54: #{tpu_custom_call.1} parent=51 // pred_check_branch
          %415 = sbr.rel (%p413) target = $region56
        $region55: #{tpu_custom_call.1} parent=51 // pred_region
          %s416 = sand.u32 %s98, 1
          %s417 = scalar_lea.sflag [#allocation4], %s416
          %s418 = sand.u32 %s98, 1
          %s419 = smul.addr %s418, 8
          %s420 = scalar_lea.vmem [#allocation8], %s419
          %421 = dma.done %s417, 128
        $region56: #{tpu_custom_call.1} parent=51 // pred_fallthru
          _
      $region52: #{tpu_custom_call.1} parent=5 // pred_fallthru
        _
    $region6: #{tpu_custom_call.1} parent=1 // loop_footer
      %s20 = sadd.s32 1, %s16
    $region7: #{tpu_custom_call.1} parent=1 // loop_footer_branch
      %15 = sbr.rel target = $region3
    $region8: #{tpu_custom_call.1} parent=1 // loop_exit
      _
    %422 = vsyncpa [#allocation3], 1
    %s423 = scalar_lea.sflag [#allocation3], 1
    %424 = vsyncpa %s423, 1
    %425 = vsyncpa [#allocation6], 1
    %426 = vsyncpa [#allocation4], 1
    %s427 = scalar_lea.sflag [#allocation4], 1
    %428 = vsyncpa %s427, 1

// kernel: tpu_custom_call.1
$region0: #{tpu_custom_call.1}
  #allocation0 [shape = 'u32[]', space=smem, size = 0x4, offset = 0x4, fixed_abs, tag = 'smem constant byte address 0x4 - core index']
  #allocation1 [shape = 'u32[144,128]{1,0:T(1,128)}', space=vmem, size = 0x12000, scoped, tag = 'internal scratch']
  %s0 = inlined_call_operand.hbm [shape: f32[16,128], index: 0, kind: input, shape index: {}]
  %s1 = inlined_call_operand.hbm [shape: f32[128,128], index: 1, kind: input, shape index: {}]
  %s2 = inlined_call_operand.hbm [shape: f32[128,128], index: 2, kind: input, shape index: {}]
  %s3 = inlined_call_operand.hbm [shape: f32[16,128], index: 3, kind: output, shape index: {}]
  %s4 = sld [smem:[#allocation0]]
  $region57: #{tpu_custom_call.1} parent=0
    _
  %s6 = ssub.s32 1, %s4
  %s7 = scalar_select 0, %s6, %s4
  $region1: #{tpu_custom_call.1} parent=0
    #allocation2 [shape = 'u8[8192]{0}', space=vmem, size = 0x2000, scoped, tag = 'input window, operand 0']
    #allocation3 [shape = 's32[2]{0}', space=sflag, size = 0x8, scoped, tag = 'scoped memory for tpu_custom_call.1']
    #allocation4 [shape = 's32[2]{0}', space=sflag, size = 0x8, scoped, tag = 'scoped memory for tpu_custom_call.1']
    #allocation5 [shape = 'u8[65536]{0}', space=vmem, size = 0x10000, scoped, tag = 'input window, operand 1, single buffered']
    #allocation6 [shape = 's32[1]{0}', space=sflag, size = 0x4, scoped, tag = 'scoped memory for tpu_custom_call.1']
    #allocation7 [shape = 'u8[65536]{0}', space=vmem, size = 0x10000, scoped, tag = 'input window, operand 2, single buffered']
    #allocation8 [shape = 'u8[8192]{0}', space=vmem, size = 0x2000, scoped, tag = 'output window, operand 0']
    %8 = vsyncpa [#allocation3], 0
    %s9 = scalar_lea.sflag [#allocation3], 1
    %10 = vsyncpa %s9, 0
    %11 = vsyncpa [#allocation6], 0
    %12 = vsyncpa [#allocation4], 0
    %s13 = scalar_lea.sflag [#allocation4], 1
    %14 = vsyncpa %s13, 0
    loop: start=0, step=1, limit=4
    $region2: #{tpu_custom_call.1} parent=1 // loop_pre_header
      _
    $region3: #{tpu_custom_call.1} parent=1 // loop_header
      %s16 = sphi 0, %s20
      %p17 = scmp.ge.s32.totalorder %s16, 4
      %s26 = sphi 0, %s28
      %s29 = sphi 0, %s26
      %s30 = sphi 0, %s29
      %s46 = sphi 0, %s30
      %s50 = sphi 0, %s50
      %s52 = sphi 0, %s50
      %s53 = sphi 0, %s52
      %s67 = sphi 0, %s53
      %s71 = sphi 0, %s71
      %s73 = sphi 0, %s71
      %s74 = sphi 0, %s73
      %s88 = sphi 0, %s74
      %s94 = sphi 0, %s96
      %s97 = sphi 0, %s94
      %s98 = sphi 0, %s97
      %s114 = sphi 0, %s98
    $region4: #{tpu_custom_call.1} parent=1 // loop_header_branch
      %19 = sbr.rel (%p17) target = $region8
    $region5: #{tpu_custom_call.1} parent=1 // loop_body
      %s21 = ssub.s32 %s16, 1
      %s22 = ssub.s32 %s16, 2
      %s23 = sadd.s32 %s16, 1
      %s24 = ssub.s32 %s16, %s23
      %p25 = scmp.eq.s32.totalorder %s24, 0
      %s27 = sadd.s32 %s26, 1
      %s28 = scalar_select %p25, %s26, %s27
      %p31 = pneg %p25
      %p32 = scmp.eq.s32.totalorder %s16, 1
      %p33 = por %p31, %p32
      %p34 = scmp.ne.s32.totalorder %s26, %s29
      %p35 = scmp.eq.s32.totalorder %s16, 0
      %p36 = por %p34, %p35
      %p37 = scmp.ne.s32.totalorder %s26, %s29
      %p38 = scmp.eq.s32.totalorder %s21, 1
      %p39 = por %p37, %p38
      %p40 = scmp.ne.s32.totalorder %s29, %s30
      %p41 = scmp.eq.s32.totalorder %s21, 0
      %p42 = por %p40, %p41
      %p43 = scmp.ne.s32.totalorder %s29, %s30
      %p44 = scmp.eq.s32.totalorder %s22, 1
      %p45 = por %p43, %p44
      %p47 = scmp.ne.s32.totalorder %s30, %s46
      %p48 = scmp.eq.s32.totalorder %s22, 0
      %p49 = por %p47, %p48
      %s51 = sadd.s32 %s50, 1
      %p54 = scmp.eq.s32.totalorder %s16, 1
      %p55 = scmp.ne.s32.totalorder %s50, %s52
      %p56 = scmp.eq.s32.totalorder %s16, 0
      %p57 = por %p55, %p56
      %p58 = scmp.ne.s32.totalorder %s50, %s52
      %p59 = scmp.eq.s32.totalorder %s21, 1
      %p60 = por %p58, %p59
      %p61 = scmp.ne.s32.totalorder %s52, %s53
      %p62 = scmp.eq.s32.totalorder %s21, 0
      %p63 = por %p61, %p62
      %p64 = scmp.ne.s32.totalorder %s52, %s53
      %p65 = scmp.eq.s32.totalorder %s22, 1
      %p66 = por %p64, %p65
      %p68 = scmp.ne.s32.totalorder %s53, %s67
      %p69 = scmp.eq.s32.totalorder %s22, 0
      %p70 = por %p68, %p69
      %s72 = sadd.s32 %s71, 1
      %p75 = scmp.eq.s32.totalorder %s16, 1
      %p76 = scmp.ne.s32.totalorder %s71, %s73
      %p77 = scmp.eq.s32.totalorder %s16, 0
      %p78 = por %p76, %p77
      %p79 = scmp.ne.s32.totalorder %s71, %s73
      %p80 = scmp.eq.s32.totalorder %s21, 1
      %p81 = por %p79, %p80
      %p82 = scmp.ne.s32.totalorder %s73, %s74
      %p83 = scmp.eq.s32.totalorder %s21, 0
      %p84 = por %p82, %p83
      %p85 = scmp.ne.s32.totalorder %s73, %s74
      %p86 = scmp.eq.s32.totalorder %s22, 1
      %p87 = por %p85, %p86
      %p89 = scmp.ne.s32.totalorder %s74, %s88
      %p90 = scmp.eq.s32.totalorder %s22, 0
      %p91 = por %p89, %p90
      %s92 = ssub.s32 %s16, %s23
      %p93 = scmp.eq.s32.totalorder %s92, 0
      %s95 = sadd.s32 %s94, 1
      %s96 = scalar_select %p93, %s94, %s95
      %p99 = pneg %p93
      %p100 = scmp.eq.s32.totalorder %s16, 1
      %p101 = por %p99, %p100
      %p102 = scmp.ne.s32.totalorder %s94, %s97
      %p103 = scmp.eq.s32.totalorder %s16, 0
      %p104 = por %p102, %p103
      %p105 = scmp.ne.s32.totalorder %s94, %s97
      %p106 = scmp.eq.s32.totalorder %s21, 1
      %p107 = por %p105, %p106
      %p108 = scmp.ne.s32.totalorder %s97, %s98
      %p109 = scmp.eq.s32.totalorder %s21, 0
      %p110 = por %p108, %p109
      %p111 = scmp.ne.s32.totalorder %s97, %s98
      %p112 = scmp.eq.s32.totalorder %s22, 1
      %p113 = por %p111, %p112
      %p115 = scmp.ne.s32.totalorder %s98, %s114
      %p116 = scmp.eq.s32.totalorder %s22, 0
      %p117 = por %p115, %p116
      %p118 = scmp.le.s32.totalorder 1, %s16
      %p119 = scmp.lt.s32.totalorder %s16, 3
      %p120 = pnand %p118, %p119
      %p121 = pneg %p120
      // Predicated region
      $region9: #{tpu_custom_call.1} parent=5 // pred_check
        _
      $region10: #{tpu_custom_call.1} parent=5 // pred_check_branch
        %123 = sbr.rel (%p120) target = $region12
      $region11: #{tpu_custom_call.1} parent=5 // pred_region
        %s124 = ssub.s32 %s16, 1
        // Predicated region
        $region13: #{tpu_custom_call.1} parent=11 // pred_check
          %p125 = pneg %p63
        $region14: #{tpu_custom_call.1} parent=11 // pred_check_branch
          %127 = sbr.rel (%p125) target = $region16
        $region15: #{tpu_custom_call.1} parent=11 // pred_region
          %s129 = ssub.s32 2048, 2048
          %130 = vsyncadd [#allocation6], %s129
          %s131 = sshll.u32 [#allocation5], 4
          %s132 = int_to_ptr.vmem [resolvable:$true] %s131
          %137 = dma.hbm_to_vmem [thread:$0]  %s1, 2048, %s132, [#allocation6], 128, 128, 8
        $region16: #{tpu_custom_call.1} parent=11 // pred_fallthru
          _
        // Predicated region
        $region17: #{tpu_custom_call.1} parent=11 // pred_check
          %p138 = pneg %p84
        $region18: #{tpu_custom_call.1} parent=11 // pred_check_branch
          %140 = sbr.rel (%p138) target = $region20
        $region19: #{tpu_custom_call.1} parent=11 // pred_region
          %s142 = ssub.s32 2048, 2048
          %143 = vsyncadd [#allocation6], %s142
          %s144 = sshll.u32 [#allocation7], 4
          %s145 = int_to_ptr.vmem [resolvable:$true] %s144
          %150 = dma.hbm_to_vmem [thread:$0]  %s2, 2048, %s145, [#allocation6], 128, 128, 8
        $region20: #{tpu_custom_call.1} parent=11 // pred_fallthru
          _
      $region12: #{tpu_custom_call.1} parent=5 // pred_fallthru
        _
      %p151 = scmp.lt.s32.totalorder %s16, 2
      // Predicated region
      $region21: #{tpu_custom_call.1} parent=5 // pred_check
        %p152 = pneg %p151
      $region22: #{tpu_custom_call.1} parent=5 // pred_check_branch
        %154 = sbr.rel (%p152) target = $region24
      $region23: #{tpu_custom_call.1} parent=5 // pred_region
        // Predicated region
        $region25: #{tpu_custom_call.1} parent=23 // pred_check
          %p155 = pneg %p36
        $region26: #{tpu_custom_call.1} parent=23 // pred_check_branch
          %157 = sbr.rel (%p155) target = $region28
        $region27: #{tpu_custom_call.1} parent=23 // pred_region
          %s158 = sand.u32 %s26, 1
          %s159 = scalar_lea.sflag [#allocation3], %s158
          %s160 = sand.u32 %s26, 1
          %s161 = smul.addr %s160, 8
          %s162 = scalar_lea.vmem [#allocation2], %s161
          %s164 = ssub.s32 128, 128
          %165 = vsyncadd %s159, %s164
          %s166 = smul.addr %s16, 128
          %s167 = scalar_lea.hbm %s0, %s166
          %s169 = sshll.u32 %s162, 4
          %s170 = int_to_ptr.vmem [resolvable:$true] %s169
          %172 = dma.hbm_to_vmem [thread:$0]  %s167, 128, %s170, %s159
        $region28: #{tpu_custom_call.1} parent=23 // pred_fallthru
          _
      $region24: #{tpu_custom_call.1} parent=5 // pred_fallthru
        _
      %p173 = scmp.le.s32.totalorder 1, %s16
      %p174 = scmp.lt.s32.totalorder %s16, 3
      %p175 = pnand %p173, %p174
      %p176 = pneg %p175
      // Predicated region
      $region29: #{tpu_custom_call.1} parent=5 // pred_check
        _
      $region30: #{tpu_custom_call.1} parent=5 // pred_check_branch
        %178 = sbr.rel (%p175) target = $region32
      $region31: #{tpu_custom_call.1} parent=5 // pred_region
        %s179 = ssub.s32 %s16, 1
        %s180 = sand.u32 %s29, 1
        %s181 = scalar_lea.sflag [#allocation3], %s180
        %s182 = sand.u32 %s29, 1
        %s183 = smul.addr %s182, 8
        %s184 = scalar_lea.vmem [#allocation2], %s183
        // Predicated region
        $region33: #{tpu_custom_call.1} parent=31 // pred_check
          %p185 = pneg %p42
        $region34: #{tpu_custom_call.1} parent=31 // pred_check_branch
          %187 = sbr.rel (%p185) target = $region36
        $region35: #{tpu_custom_call.1} parent=31 // pred_region
          %188 = dma.done %s181, 128
        $region36: #{tpu_custom_call.1} parent=31 // pred_fallthru
          _
        // Predicated region
        $region37: #{tpu_custom_call.1} parent=31 // pred_check
          %p189 = pneg %p63
        $region38: #{tpu_custom_call.1} parent=31 // pred_check_branch
          %191 = sbr.rel (%p189) target = $region40
        $region39: #{tpu_custom_call.1} parent=31 // pred_region
          %192 = dma.done [#allocation6], 2048
        $region40: #{tpu_custom_call.1} parent=31 // pred_fallthru
          _
        // Predicated region
        $region41: #{tpu_custom_call.1} parent=31 // pred_check
          %p193 = pneg %p84
        $region42: #{tpu_custom_call.1} parent=31 // pred_check_branch
          %195 = sbr.rel (%p193) target = $region44
        $region43: #{tpu_custom_call.1} parent=31 // pred_region
          %196 = dma.done [#allocation6], 2048
        $region44: #{tpu_custom_call.1} parent=31 // pred_fallthru
          _
        %s197 = sand.u32 %s29, 1
        %s198 = scalar_lea.sflag [#allocation3], %s197
        %s199 = sand.u32 %s29, 1
        %s200 = smul.addr %s199, 8
        %s201 = scalar_lea.vmem [#allocation2], %s200
        %p202 = pneg %p42
        %p203 = pneg %p39
        %p204 = pneg %p63
        %p205 = pneg %p60
        %p206 = pneg %p84
        %p207 = pneg %p81
        %p208 = pneg %p110
        %p209 = pneg %p107
        %s210 = sand.u32 %s97, 1
        %s211 = scalar_lea.sflag [#allocation4], %s210
        %s212 = sand.u32 %s97, 1
        %s213 = smul.addr %s212, 8
        %s214 = scalar_lea.vmem [#allocation8], %s213
        %v215 = vld [vmem:[%s184] sm:$0xff]
        %v216 = vld [vmem:[#allocation5] sm:$0xff]
        %v217 = vld [vmem:[#allocation5 + $0x8] sm:$0xff]
        %v218 = vld [vmem:[#allocation5 + $0x10] sm:$0xff]
        %v219 = vld [vmem:[#allocation5 + $0x18] sm:$0xff]
        %v220 = vld [vmem:[#allocation5 + $0x20] sm:$0xff]
        %v221 = vld [vmem:[#allocation5 + $0x28] sm:$0xff]
        %v222 = vld [vmem:[#allocation5 + $0x30] sm:$0xff]
        %v223 = vld [vmem:[#allocation5 + $0x38] sm:$0xff]
        %v224 = vld [vmem:[#allocation5 + $0x40] sm:$0xff]
        %v225 = vld [vmem:[#allocation5 + $0x48] sm:$0xff]
        %v226 = vld [vmem:[#allocation5 + $0x50] sm:$0xff]
        %v227 = vld [vmem:[#allocation5 + $0x58] sm:$0xff]
        %v228 = vld [vmem:[#allocation5 + $0x60] sm:$0xff]
        %v229 = vld [vmem:[#allocation5 + $0x68] sm:$0xff]
        %v230 = vld [vmem:[#allocation5 + $0x70] sm:$0xff]
        %v231 = vld [vmem:[#allocation5 + $0x78] sm:$0xff]
        %232 = vmatprep.subr.mxu0 0.0
        %233 = vmatpush1.msra.mxu0 %v216
        %234 = vmatprep.subr.mxu0 0.0
        %235 = vmatpush1.msra.mxu0 %v217
        %236 = vmatprep.subr.mxu0 0.0
        %237 = vmatpush1.msra.mxu0 %v218
        %238 = vmatprep.subr.mxu0 0.0
        %239 = vmatpush1.msra.mxu0 %v219
        %240 = vmatprep.subr.mxu0 0.0
        %241 = vmatpush1.msra.mxu0 %v220
        %242 = vmatprep.subr.mxu0 0.0
        %243 = vmatpush1.msra.mxu0 %v221
        %244 = vmatprep.subr.mxu0 0.0
        %245 = vmatpush1.msra.mxu0 %v222
        %246 = vmatprep.subr.mxu0 0.0
        %247 = vmatpush1.msra.mxu0 %v223
        %248 = vmatprep.subr.mxu0 0.0
        %249 = vmatpush1.msra.mxu0 %v224
        %250 = vmatprep.subr.mxu0 0.0
        %251 = vmatpush1.msra.mxu0 %v225
        %252 = vmatprep.subr.mxu0 0.0
        %253 = vmatpush1.msra.mxu0 %v226
        %254 = vmatprep.subr.mxu0 0.0
        %255 = vmatpush1.msra.mxu0 %v227
        %256 = vmatprep.subr.mxu0 0.0
        %257 = vmatpush1.msra.mxu0 %v228
        %258 = vmatprep.subr.mxu0 0.0
        %259 = vmatpush1.msra.mxu0 %v229
        %260 = vmatprep.subr.mxu0 0.0
        %261 = vmatpush1.msra.mxu0 %v230
        %262 = vmatprep.subr.mxu0 0.0
        %263 = vmatpush1.msra.mxu0 %v231
        %264 = vmatprep.subr.mxu0 0.0
        %265 = vmatpush1.msra.mxu0 0.0
        %266 = vmatprep.subr.mxu0 0.0
        %267 = vmatpush1.msra.mxu0 0.0
        %268 = vmatprep.subr.mxu0 0.0
        %269 = vmatpush1.msra.mxu0 0.0
        %270 = vmatprep.subr.mxu0 0.0
        %271 = vmatpush1.msra.mxu0 0.0
        %272 = vmatprep.subr.mxu0 0.0
        %273 = vmatpush1.msra.mxu0 0.0
        %274 = vmatprep.subr.mxu0 0.0
        %275 = vmatpush1.msra.mxu0 0.0
        %276 = vmatprep.subr.mxu0 0.0
        %277 = vmatpush1.msra.mxu0 0.0
        %278 = vmatprep.subr.mxu0 0.0
        %279 = vmatpush1.msra.mxu0 0.0
        %280 = vmatprep.subr.mxu0 0.0
        %281 = vmatpush1.msra.mxu0 0.0
        %282 = vmatprep.subr.mxu0 0.0
        %283 = vmatpush1.msra.mxu0 0.0
        %284 = vmatprep.subr.mxu0 0.0
        %285 = vmatpush1.msra.mxu0 0.0
        %286 = vmatprep.subr.mxu0 0.0
        %287 = vmatpush1.msra.mxu0 0.0
        %288 = vmatprep.subr.mxu0 0.0
        %289 = vmatpush1.msra.mxu0 0.0
        %290 = vmatprep.subr.mxu0 0.0
        %291 = vmatpush1.msra.mxu0 0.0
        %292 = vmatprep.subr.mxu0 0.0
        %293 = vmatpush1.msra.mxu0 0.0
        %294 = vmatprep.subr.mxu0 0.0
        %295 = vmatpush1.msra.mxu0 0.0
        %296 = vmatprep.mubr.f32.mxu0 0.0
        %297 = vmatmul.mubr.f32.gmra.mrb[0].mxu0 %v215
        %v298 = vpop.f32.mrb[0].mxu0
        %v299 = vadd.f32 0.0, %v298
        %v300 = vpop.f32.mrb[0].mxu0
        %301 = vdwg.mxu0
        %v302 = vmax.f32 %v299, 0.0
        %v303 = vld [vmem:[#allocation7] sm:$0xff]
        %v304 = vld [vmem:[#allocation7 + $0x8] sm:$0xff]
        %v305 = vld [vmem:[#allocation7 + $0x10] sm:$0xff]
        %v306 = vld [vmem:[#allocation7 + $0x18] sm:$0xff]
        %v307 = vld [vmem:[#allocation7 + $0x20] sm:$0xff]
        %v308 = vld [vmem:[#allocation7 + $0x28] sm:$0xff]
        %v309 = vld [vmem:[#allocation7 + $0x30] sm:$0xff]
        %v310 = vld [vmem:[#allocation7 + $0x38] sm:$0xff]
        %v311 = vld [vmem:[#allocation7 + $0x40] sm:$0xff]
        %v312 = vld [vmem:[#allocation7 + $0x48] sm:$0xff]
        %v313 = vld [vmem:[#allocation7 + $0x50] sm:$0xff]
        %v314 = vld [vmem:[#allocation7 + $0x58] sm:$0xff]
        %v315 = vld [vmem:[#allocation7 + $0x60] sm:$0xff]
        %v316 = vld [vmem:[#allocation7 + $0x68] sm:$0xff]
        %v317 = vld [vmem:[#allocation7 + $0x70] sm:$0xff]
        %v318 = vld [vmem:[#allocation7 + $0x78] sm:$0xff]
        %319 = vmatprep.subr.mxu0 0.0
        %320 = vmatpush1.msra.mxu0 %v303
        %321 = vmatprep.subr.mxu0 0.0
        %322 = vmatpush1.msra.mxu0 %v304
        %323 = vmatprep.subr.mxu0 0.0
        %324 = vmatpush1.msra.mxu0 %v305
        %325 = vmatprep.subr.mxu0 0.0
        %326 = vmatpush1.msra.mxu0 %v306
        %327 = vmatprep.subr.mxu0 0.0
        %328 = vmatpush1.msra.mxu0 %v307
        %329 = vmatprep.subr.mxu0 0.0
        %330 = vmatpush1.msra.mxu0 %v308
        %331 = vmatprep.subr.mxu0 0.0
        %332 = vmatpush1.msra.mxu0 %v309
        %333 = vmatprep.subr.mxu0 0.0
        %334 = vmatpush1.msra.mxu0 %v310
        %335 = vmatprep.subr.mxu0 0.0
        %336 = vmatpush1.msra.mxu0 %v311
        %337 = vmatprep.subr.mxu0 0.0
        %338 = vmatpush1.msra.mxu0 %v312
        %339 = vmatprep.subr.mxu0 0.0
        %340 = vmatpush1.msra.mxu0 %v313
        %341 = vmatprep.subr.mxu0 0.0
        %342 = vmatpush1.msra.mxu0 %v314
        %343 = vmatprep.subr.mxu0 0.0
        %344 = vmatpush1.msra.mxu0 %v315
        %345 = vmatprep.subr.mxu0 0.0
        %346 = vmatpush1.msra.mxu0 %v316
        %347 = vmatprep.subr.mxu0 0.0
        %348 = vmatpush1.msra.mxu0 %v317
        %349 = vmatprep.subr.mxu0 0.0
        %350 = vmatpush1.msra.mxu0 %v318
        %351 = vmatprep.subr.mxu0 0.0
        %352 = vmatpush1.msra.mxu0 0.0
        %353 = vmatprep.subr.mxu0 0.0
        %354 = vmatpush1.msra.mxu0 0.0
        %355 = vmatprep.subr.mxu0 0.0
        %356 = vmatpush1.msra.mxu0 0.0
        %357 = vmatprep.subr.mxu0 0.0
        %358 = vmatpush1.msra.mxu0 0.0
        %359 = vmatprep.subr.mxu0 0.0
        %360 = vmatpush1.msra.mxu0 0.0
        %361 = vmatprep.subr.mxu0 0.0
        %362 = vmatpush1.msra.mxu0 0.0
        %363 = vmatprep.subr.mxu0 0.0
        %364 = vmatpush1.msra.mxu0 0.0
        %365 = vmatprep.subr.mxu0 0.0
        %366 = vmatpush1.msra.mxu0 0.0
        %367 = vmatprep.subr.mxu0 0.0
        %368 = vmatpush1.msra.mxu0 0.0
        %369 = vmatprep.subr.mxu0 0.0
        %370 = vmatpush1.msra.mxu0 0.0
        %371 = vmatprep.subr.mxu0 0.0
        %372 = vmatpush1.msra.mxu0 0.0
        %373 = vmatprep.subr.mxu0 0.0
        %374 = vmatpush1.msra.mxu0 0.0
        %375 = vmatprep.subr.mxu0 0.0
        %376 = vmatpush1.msra.mxu0 0.0
        %377 = vmatprep.subr.mxu0 0.0
        %378 = vmatpush1.msra.mxu0 0.0
        %379 = vmatprep.subr.mxu0 0.0
        %380 = vmatpush1.msra.mxu0 0.0
        %381 = vmatprep.subr.mxu0 0.0
        %382 = vmatpush1.msra.mxu0 0.0
        %383 = vmatprep.mubr.f32.mxu0 0.0
        %384 = vmatmul.mubr.f32.gmra.mrb[0].mxu0 %v302
        %v385 = vpop.f32.mrb[0].mxu0
        %v386 = vadd.f32 0.0, %v385
        %v387 = vpop.f32.mrb[0].mxu0
        %388 = vdwg.mxu0
        %389 = vst [vmem:[%s214] sm:$0xff] %v386
        %s390 = sand.u32 %s97, 1
        %s391 = scalar_lea.sflag [#allocation4], %s390
        %s392 = sand.u32 %s97, 1
        %s393 = smul.addr %s392, 8
        %s394 = scalar_lea.vmem [#allocation8], %s393
        // Predicated region
        $region45: #{tpu_custom_call.1} parent=31 // pred_check
          %p395 = pneg %p107
        $region46: #{tpu_custom_call.1} parent=31 // pred_check_branch
          %397 = sbr.rel (%p395) target = $region48
        $region47: #{tpu_custom_call.1} parent=31 // pred_region
          %s399 = ssub.s32 128, 128
          %400 = vsyncadd %s391, %s399
          %s401 = smul.addr %s21, 128
          %s402 = scalar_lea.hbm %s3, %s401
          %s404 = sshll.u32 %s394, 4
          %s405 = int_to_ptr.vmem [resolvable:$true] %s404
          %407 = dma.vmem_to_hbm [thread:$0]  %s405, 128, %s402, %s391
        $region48: #{tpu_custom_call.1} parent=31 // pred_fallthru
          _
      $region32: #{tpu_custom_call.1} parent=5 // pred_fallthru
        _
      %p408 = scmp.le.s32.totalorder 2, %s16
      // Predicated region
      $region49: #{tpu_custom_call.1} parent=5 // pred_check
        %p409 = pneg %p408
      $region50: #{tpu_custom_call.1} parent=5 // pred_check_branch
        %411 = sbr.rel (%p409) target = $region52
      $region51: #{tpu_custom_call.1} parent=5 // pred_region
        %s412 = ssub.s32 %s16, 2
        // Predicated region
        $region53: #{tpu_custom_call.1} parent=51 // pred_check
          %p413 = pneg %p113
        $region54: #{tpu_custom_call.1} parent=51 // pred_check_branch
          %415 = sbr.rel (%p413) target = $region56
        $region55: #{tpu_custom_call.1} parent=51 // pred_region
          %s416 = sand.u32 %s98, 1
          %s417 = scalar_lea.sflag [#allocation4], %s416
          %s418 = sand.u32 %s98, 1
          %s419 = smul.addr %s418, 8
          %s420 = scalar_lea.vmem [#allocation8], %s419
          %421 = dma.done %s417, 128
        $region56: #{tpu_custom_call.1} parent=51 // pred_fallthru
          _
      $region52: #{tpu_custom_call.1} parent=5 // pred_fallthru
        _
    $region6: #{tpu_custom_call.1} parent=1 // loop_footer
      %s20 = sadd.s32 1, %s16
    $region7: #{tpu_custom_call.1} parent=1 // loop_footer_branch
      %15 = sbr.rel target = $region3
    $region8: #{tpu_custom_call.1} parent=1 // loop_exit
      _
    %422 = vsyncpa [#allocation3], 1
    %s423 = scalar_lea.sflag [#allocation3], 1
    %424 = vsyncpa %s423, 1
    %425 = vsyncpa [#allocation6], 1
    %426 = vsyncpa [#allocation4], 1
    %s427 = scalar_lea.sflag [#allocation4], 1
    %428 = vsyncpa %s427, 1

</llo_original>
